<compile_context>
chip_gen: v7x
topology: tpu7x:2x2x1
jax: 0.10.0
libtpu: 0.0.40
codegen_flags: <defaults>
</compile_context>

<pallas_src>
import numpy as np
import jax
import jax.numpy as jnp
from jax.experimental import pallas as pl
from jax.experimental.pallas import tpu as pltpu


# ---------------------------------------------------------------------------
# Parameter construction (deterministic, mirrors nn.Linear shapes/init bounds)
# ---------------------------------------------------------------------------
def init_conditional_net_params(layer_specs, key):
    """Returns list of (W[(out,in)], bias[(out,1)] or None) in PyTorch layout."""
    params = []
    for spec in layer_specs:
        in_f, out_f = spec[0], spec[1]
        has_bias = spec[2] if len(spec) == 3 else False
        key, k_w, k_b = jax.random.split(key, 3)
        bound = 1.0 / np.sqrt(in_f)  # PyTorch nn.Linear default bound
        w = jax.random.uniform(k_w, (out_f, in_f), jnp.float32, -bound, bound)
        b = (
            jax.random.uniform(k_b, (out_f, 1), jnp.float32, -bound, bound)
            if has_bias
            else None
        )
        params.append((w, b))
    return params


# ---------------------------------------------------------------------------
# Fused MLP Pallas kernel (all layers in one kernel, batch tiled on lanes)
# ---------------------------------------------------------------------------
def make_mlp_kernel(bias_flags):
    n_layers = len(bias_flags)

    def mlp_kernel(x_ref, *refs):
        out_ref = refs[-1]
        param_refs = refs[:-1]
        h = x_ref[...]  # (in_f, batch_tile) -- batch on lanes
        idx = 0
        for i, has_b in enumerate(bias_flags):
            w = param_refs[idx][...]  # (out_f, in_f)
            idx += 1
            # (out_f, in_f) @ (in_f, bt) -> (out_f, bt); batch dim >=128 per push
            h = jnp.dot(w, h, preferred_element_type=jnp.float32)
            if has_b:
                h = h + param_refs[idx][...]  # (out_f, 1) broadcasts over lanes
                idx += 1
            if i != n_layers - 1:
                h = jnp.maximum(h, 0.0)  # activation = ReLU
        out_ref[...] = h.astype(out_ref.dtype)

    return mlp_kernel


def conditional_net_forward(x, params, *, batch_tile=512):
    """x: (batch, in_features) float32. Returns (batch, out_features) float32."""
    batch, in_f = x.shape
    out_f = params[-1][0].shape[0]
    bias_flags = tuple(b is not None for (_, b) in params)

    # --- choose a lane-aligned batch tile and pad the batch to match ---------
    bt = max(128, ((batch_tile + 127) // 128) * 128)  # multiple of 128 lanes
    if batch <= bt:
        # Tiny batch: one grid step, tile = batch rounded up to a lane multiple.
        bt = max(128, ((batch + 127) // 128) * 128)
    padded_batch = pl.cdiv(batch, bt) * bt
    grid = (padded_batch // bt,)

    # Batch on lanes: transpose to (in_f, batch) and zero-pad the batch axis.
    x_t = x.T
    if padded_batch != batch:
        x_t = jnp.pad(x_t, ((0, 0), (0, padded_batch - batch)))

    # Flatten param arrays in kernel-argument order.
    flat_params = []
    for w, b in params:
        flat_params.append(w)
        if b is not None:
            flat_params.append(b)

    in_specs = [pl.BlockSpec((in_f, bt), lambda i: (0, i))]
    for p in flat_params:
        # Full-array blocks (constant index_map -> resident, no re-DMA per step).
        in_specs.append(pl.BlockSpec(p.shape, lambda i: (0, 0)))

    out_spec = pl.BlockSpec((out_f, bt), lambda i: (0, i))

    kernel = make_mlp_kernel(bias_flags)

    out_t = pl.pallas_call(
        kernel,
        out_shape=jax.ShapeDtypeStruct((out_f, padded_batch), jnp.float32),
        grid_spec=pltpu.PrefetchScalarGridSpec(
            num_scalar_prefetch=0,
            grid=grid,
            in_specs=in_specs,
            out_specs=out_spec,
        ),
        compiler_params=pltpu.CompilerParams(
            dimension_semantics=("parallel",),
        ),
    )(x_t, *flat_params)

    # Back to (batch, out_features), dropping the batch padding.
    return out_t[:, :batch].T


# ---------------------------------------------------------------------------
# Pure-JAX reference (mirrors the PyTorch forward exactly, in f32)
# ---------------------------------------------------------------------------
def reference_forward(x, params):
    h = x
    n = len(params)
    for i, (w, b) in enumerate(params):
        h = h @ w.T  # PyTorch nn.Linear: y = x @ W.T + b
        if b is not None:
            h = h + b[:, 0]
        if i != n - 1:
            h = jnp.maximum(h, 0.0)
    return h


if __name__ == "__main__":
    # Small layer_specs consistent with the module's constructor signature:
    # (in, out, bias?) tuples; activation = ReLU.
    layer_specs = [(16, 32, True), (32, 32, True), (32, 8)]  # last layer: no bias

    key = jax.random.PRNGKey(0)
    key, k_x = jax.random.split(key)
    params = init_conditional_net_params(layer_specs, key)

    batch = 16  # small, non-multiple of 128: wrapper pads to one 128-lane tile
    x = jax.random.normal(k_x, (batch, layer_specs[0][0]), jnp.float32)

    out = conditional_net_forward(x, params)
    out = jax.block_until_ready(out)

    ref = reference_forward(x, params)
    np.testing.assert_allclose(np.asarray(out), np.asarray(ref), rtol=1e-5, atol=1e-5)

    print("KERNEL_OK")
</pallas_src>

<mosaic_0001>
module attributes {stable_mosaic.version = 11 : i64} {
  func.func @mlp_kernel(%arg0: i32, %arg1: memref<16x128xf32, #tpu.memory_space<vmem>>, %arg2: memref<32x16xf32, #tpu.memory_space<vmem>>, %arg3: memref<32x1xf32, #tpu.memory_space<vmem>>, %arg4: memref<32x32xf32, #tpu.memory_space<vmem>>, %arg5: memref<32x1xf32, #tpu.memory_space<vmem>>, %arg6: memref<8x32xf32, #tpu.memory_space<vmem>>, %arg7: memref<8x128xf32, #tpu.memory_space<vmem>>) attributes {dimension_semantics = [#tpu.dimension_semantics<parallel>], iteration_bounds = array<i64: 1>, scalar_prefetch = 0 : i64, scratch_operands = 0 : i64, tpu.core_type = #tpu.core_type<tc>, window_params = [{transform_indices = @transform_0, window_bounds = array<i64: 16, 128>}, {pipeline_mode = #tpu.pipeline_mode<synchronous>, transform_indices = @transform_1, window_bounds = array<i64: 32, 16>}, {pipeline_mode = #tpu.pipeline_mode<synchronous>, transform_indices = @transform_2, window_bounds = array<i64: 32, 1>}, {pipeline_mode = #tpu.pipeline_mode<synchronous>, transform_indices = @transform_3, window_bounds = array<i64: 32, 32>}, {pipeline_mode = #tpu.pipeline_mode<synchronous>, transform_indices = @transform_4, window_bounds = array<i64: 32, 1>}, {pipeline_mode = #tpu.pipeline_mode<synchronous>, transform_indices = @transform_5, window_bounds = array<i64: 8, 32>}, {transform_indices = @transform_6, window_bounds = array<i64: 8, 128>}]} {
    %c0 = arith.constant 0 : index
    %c0_0 = arith.constant 0 : index
    %0 = vector.load %arg1[%c0, %c0_0] : memref<16x128xf32, #tpu.memory_space<vmem>>, vector<16x128xf32>
    %c0_1 = arith.constant 0 : index
    %c0_2 = arith.constant 0 : index
    %1 = vector.load %arg2[%c0_1, %c0_2] : memref<32x16xf32, #tpu.memory_space<vmem>>, vector<32x16xf32>
    %cst = arith.constant dense<0.000000e+00> : vector<32x128xf32>
    %2 = tpu.matmul %1, %0, %cst {dimension_numbers = #tpu.dot_dimension_numbers<[1], [0], [0], [1], [0, 0, 1, 1], [], []>} : vector<32x16xf32>, vector<16x128xf32>, vector<32x128xf32> -> vector<32x128xf32>
    %c0_3 = arith.constant 0 : index
    %c0_4 = arith.constant 0 : index
    %3 = vector.load %arg3[%c0_3, %c0_4] : memref<32x1xf32, #tpu.memory_space<vmem>>, vector<32x1xf32>
    %4 = vector.broadcast %3 : vector<32x1xf32> to vector<32x128xf32>
    %5 = arith.addf %2, %4 : vector<32x128xf32>
    %cst_5 = arith.constant 0.000000e+00 : f32
    %6 = vector.broadcast %cst_5 : f32 to vector<32x128xf32>
    %7 = arith.maximumf %5, %6 : vector<32x128xf32>
    %c0_6 = arith.constant 0 : index
    %c0_7 = arith.constant 0 : index
    %8 = vector.load %arg4[%c0_6, %c0_7] : memref<32x32xf32, #tpu.memory_space<vmem>>, vector<32x32xf32>
    %cst_8 = arith.constant dense<0.000000e+00> : vector<32x128xf32>
    %9 = tpu.matmul %8, %7, %cst_8 {dimension_numbers = #tpu.dot_dimension_numbers<[1], [0], [0], [1], [0, 0, 1, 1], [], []>} : vector<32x32xf32>, vector<32x128xf32>, vector<32x128xf32> -> vector<32x128xf32>
    %c0_9 = arith.constant 0 : index
    %c0_10 = arith.constant 0 : index
    %10 = vector.load %arg5[%c0_9, %c0_10] : memref<32x1xf32, #tpu.memory_space<vmem>>, vector<32x1xf32>
    %11 = vector.broadcast %10 : vector<32x1xf32> to vector<32x128xf32>
    %12 = arith.addf %9, %11 : vector<32x128xf32>
    %cst_11 = arith.constant 0.000000e+00 : f32
    %13 = vector.broadcast %cst_11 : f32 to vector<32x128xf32>
    %14 = arith.maximumf %12, %13 : vector<32x128xf32>
    %c0_12 = arith.constant 0 : index
    %c0_13 = arith.constant 0 : index
    %15 = vector.load %arg6[%c0_12, %c0_13] : memref<8x32xf32, #tpu.memory_space<vmem>>, vector<8x32xf32>
    %cst_14 = arith.constant dense<0.000000e+00> : vector<8x128xf32>
    %16 = tpu.matmul %15, %14, %cst_14 {dimension_numbers = #tpu.dot_dimension_numbers<[1], [0], [0], [1], [0, 0, 1, 1], [], []>} : vector<8x32xf32>, vector<32x128xf32>, vector<8x128xf32> -> vector<8x128xf32>
    %c0_15 = arith.constant 0 : index
    %c0_16 = arith.constant 0 : index
    %17 = vector.load %arg7[%c0_15, %c0_16] : memref<8x128xf32, #tpu.memory_space<vmem>>, vector<8x128xf32>
    tpu.vector_store %arg7[%c0_15, %c0_16], %16 {strides = array<i32>} : memref<8x128xf32, #tpu.memory_space<vmem>>, vector<8x128xf32>,
    return
  }
  func.func @transform_0(%arg0: i32) -> (i32, i32) {
    %c0_i32 = arith.constant 0 : i32
    %c0_i32_0 = arith.constant 0 : i32
    return %c0_i32, %arg0 : i32, i32
  }
  func.func @transform_1(%arg0: i32) -> (i32, i32) {
    %c0_i32 = arith.constant 0 : i32
    %c0_i32_0 = arith.constant 0 : i32
    %c0_i32_1 = arith.constant 0 : i32
    return %c0_i32, %c0_i32_0 : i32, i32
  }
  func.func @transform_2(%arg0: i32) -> (i32, i32) {
    %c0_i32 = arith.constant 0 : i32
    %c0_i32_0 = arith.constant 0 : i32
    %c0_i32_1 = arith.constant 0 : i32
    return %c0_i32, %c0_i32_0 : i32, i32
  }
  func.func @transform_3(%arg0: i32) -> (i32, i32) {
    %c0_i32 = arith.constant 0 : i32
    %c0_i32_0 = arith.constant 0 : i32
    %c0_i32_1 = arith.constant 0 : i32
    return %c0_i32, %c0_i32_0 : i32, i32
  }
  func.func @transform_4(%arg0: i32) -> (i32, i32) {
    %c0_i32 = arith.constant 0 : i32
    %c0_i32_0 = arith.constant 0 : i32
    %c0_i32_1 = arith.constant 0 : i32
    return %c0_i32, %c0_i32_0 : i32, i32
  }
  func.func @transform_5(%arg0: i32) -> (i32, i32) {
    %c0_i32 = arith.constant 0 : i32
    %c0_i32_0 = arith.constant 0 : i32
    %c0_i32_1 = arith.constant 0 : i32
    return %c0_i32, %c0_i32_0 : i32, i32
  }
  func.func @transform_6(%arg0: i32) -> (i32, i32) {
    %c0_i32 = arith.constant 0 : i32
    %c0_i32_0 = arith.constant 0 : i32
    return %c0_i32, %arg0 : i32, i32
  }
}

</mosaic_0001>

<llo_original>
// kernel: tpu_custom_call.1
$region0: #{tpu_custom_call.1}
  #allocation0 [shape = 'u32[]', space=smem, size = 0x4, offset = 0x4, fixed_abs, tag = 'smem constant byte address 0x4 - core index']
  #allocation1 [shape = 'u32[144,128]{1,0:T(1,128)}', space=vmem, size = 0x12000, scoped, tag = 'internal scratch']
  %s0 = inlined_call_operand.vmem [shape: f32[16,128], index: 0, kind: input, shape index: {}]
  %s1 = inlined_call_operand.vmem [shape: f32[32,16], index: 1, kind: input, shape index: {}]
  %s2 = inlined_call_operand.vmem [shape: f32[32,1], index: 2, kind: input, shape index: {}]
  %s3 = inlined_call_operand.vmem [shape: f32[32,32], index: 3, kind: input, shape index: {}]
  %s4 = inlined_call_operand.vmem [shape: f32[32,1], index: 4, kind: input, shape index: {}]
  %s5 = inlined_call_operand.vmem [shape: f32[8,32], index: 5, kind: input, shape index: {}]
  %s6 = inlined_call_operand.hbm [shape: f32[8,128], index: 6, kind: output, shape index: {}]
  %s7 = sld [smem:[#allocation0]]
  $region34: #{tpu_custom_call.1} parent=0
    _
  %s9 = ssub.s32 1, %s7
  %s10 = scalar_select 0, %s9, %s7
  $region1: #{tpu_custom_call.1} parent=0
    #allocation2 [shape = 'u8[4096]{0}', space=vmem, size = 0x1000, scoped, tag = 'output window, operand 0, single buffered']
    #allocation3 [shape = 's32[1]{0}', space=sflag, size = 0x4, scoped, tag = 'scoped memory for tpu_custom_call.1']
    %11 = vsyncpa [#allocation3], 0
    // Predicated region
    $region2: #{tpu_custom_call.1} parent=1 // pred_check
      _
    $region3: #{tpu_custom_call.1} parent=1 // pred_check_branch
      %13 = sbr.rel (0) target = $region5
    $region4: #{tpu_custom_call.1} parent=1 // pred_region
      _
    $region5: #{tpu_custom_call.1} parent=1 // pred_fallthru
      _
    // Predicated region
    $region6: #{tpu_custom_call.1} parent=1 // pred_check
      _
    $region7: #{tpu_custom_call.1} parent=1 // pred_check_branch
      %15 = sbr.rel (0) target = $region9
    $region8: #{tpu_custom_call.1} parent=1 // pred_region
      _
    $region9: #{tpu_custom_call.1} parent=1 // pred_fallthru
      _
    // Predicated region
    $region10: #{tpu_custom_call.1} parent=1 // pred_check
      _
    $region11: #{tpu_custom_call.1} parent=1 // pred_check_branch
      %17 = sbr.rel (0) target = $region13
    $region12: #{tpu_custom_call.1} parent=1 // pred_region
      _
    $region13: #{tpu_custom_call.1} parent=1 // pred_fallthru
      _
    // Predicated region
    $region14: #{tpu_custom_call.1} parent=1 // pred_check
      _
    $region15: #{tpu_custom_call.1} parent=1 // pred_check_branch
      %19 = sbr.rel (0) target = $region17
    $region16: #{tpu_custom_call.1} parent=1 // pred_region
      _
    $region17: #{tpu_custom_call.1} parent=1 // pred_fallthru
      _
    // Predicated region
    $region18: #{tpu_custom_call.1} parent=1 // pred_check
      _
    $region19: #{tpu_custom_call.1} parent=1 // pred_check_branch
      %21 = sbr.rel (0) target = $region21
    $region20: #{tpu_custom_call.1} parent=1 // pred_region
      _
    $region21: #{tpu_custom_call.1} parent=1 // pred_fallthru
      _
    // Predicated region
    $region22: #{tpu_custom_call.1} parent=1 // pred_check
      _
    $region23: #{tpu_custom_call.1} parent=1 // pred_check_branch
      %23 = sbr.rel (0) target = $region25
    $region24: #{tpu_custom_call.1} parent=1 // pred_region
      _
    $region25: #{tpu_custom_call.1} parent=1 // pred_fallthru
      _
    %v24 = vld [vmem:[%s0] sm:$0xff]
    %v25 = vld [vmem:[%s0 + $0x8] sm:$0xff]
    %v26 = vld [vmem:[%s1] sm:$0xff]
    %v27 = vld [vmem:[%s1 + $0x8] sm:$0xff]
    %v28 = vld [vmem:[%s1 + $0x10] sm:$0xff]
    %v29 = vld [vmem:[%s1 + $0x18] sm:$0xff]
    %v30 = vld [vmem:[%s2] sm:$0xff]
    %v31 = vld [vmem:[%s2 + $0x8] sm:$0xff]
    %v32 = vld [vmem:[%s2 + $0x10] sm:$0xff]
    %v33 = vld [vmem:[%s2 + $0x18] sm:$0xff]
    %35 = vset.pattern.permute.xlu0 0
    %36 = vperm.xlu0 %35, %v30
    %v37 = vpop.permute.xlu0 %36
    %40 = vset.pattern.permute.xlu0 0
    %41 = vperm.xlu0 %40, %v31
    %v42 = vpop.permute.xlu0 %41
    %45 = vset.pattern.permute.xlu0 0
    %46 = vperm.xlu0 %45, %v32
    %v47 = vpop.permute.xlu0 %46
    %50 = vset.pattern.permute.xlu0 0
    %51 = vperm.xlu0 %50, %v33
    %v52 = vpop.permute.xlu0 %51
    %vm54 = vcmask 130048
    %v56 = vsel %vm54, %v26, 0
    %v59 = vsel %vm54, %v27, 0
    %v62 = vsel %vm54, %v28, 0
    %v65 = vsel %vm54, %v29, 0
    %67 = vmatprep.subr.mxu0 0.0
    %68 = vmatpush1.msra.mxu0 %v24
    %69 = vmatprep.subr.mxu0 0.0
    %70 = vmatpush1.msra.mxu0 %v25
    %71 = vmatprep.subr.mxu0 0.0
    %72 = vmatpush1.msra.mxu0 0.0
    %73 = vmatprep.subr.mxu0 0.0
    %74 = vmatpush1.msra.mxu0 0.0
    %75 = vmatprep.subr.mxu0 0.0
    %76 = vmatpush1.msra.mxu0 0.0
    %77 = vmatprep.subr.mxu0 0.0
    %78 = vmatpush1.msra.mxu0 0.0
    %79 = vmatprep.subr.mxu0 0.0
    %80 = vmatpush1.msra.mxu0 0.0
    %81 = vmatprep.subr.mxu0 0.0
    %82 = vmatpush1.msra.mxu0 0.0
    %83 = vmatprep.subr.mxu0 0.0
    %84 = vmatpush1.msra.mxu0 0.0
    %85 = vmatprep.subr.mxu0 0.0
    %86 = vmatpush1.msra.mxu0 0.0
    %87 = vmatprep.subr.mxu0 0.0
    %88 = vmatpush1.msra.mxu0 0.0
    %89 = vmatprep.subr.mxu0 0.0
    %90 = vmatpush1.msra.mxu0 0.0
    %91 = vmatprep.subr.mxu0 0.0
    %92 = vmatpush1.msra.mxu0 0.0
    %93 = vmatprep.subr.mxu0 0.0
    %94 = vmatpush1.msra.mxu0 0.0
    %95 = vmatprep.subr.mxu0 0.0
    %96 = vmatpush1.msra.mxu0 0.0
    %97 = vmatprep.subr.mxu0 0.0
    %98 = vmatpush1.msra.mxu0 0.0
    %99 = vmatprep.subr.mxu0 0.0
    %100 = vmatpush1.msra.mxu0 0.0
    %101 = vmatprep.subr.mxu0 0.0
    %102 = vmatpush1.msra.mxu0 0.0
    %103 = vmatprep.subr.mxu0 0.0
    %104 = vmatpush1.msra.mxu0 0.0
    %105 = vmatprep.subr.mxu0 0.0
    %106 = vmatpush1.msra.mxu0 0.0
    %107 = vmatprep.subr.mxu0 0.0
    %108 = vmatpush1.msra.mxu0 0.0
    %109 = vmatprep.subr.mxu0 0.0
    %110 = vmatpush1.msra.mxu0 0.0
    %111 = vmatprep.subr.mxu0 0.0
    %112 = vmatpush1.msra.mxu0 0.0
    %113 = vmatprep.subr.mxu0 0.0
    %114 = vmatpush1.msra.mxu0 0.0
    %115 = vmatprep.subr.mxu0 0.0
    %116 = vmatpush1.msra.mxu0 0.0
    %117 = vmatprep.subr.mxu0 0.0
    %118 = vmatpush1.msra.mxu0 0.0
    %119 = vmatprep.subr.mxu0 0.0
    %120 = vmatpush1.msra.mxu0 0.0
    %121 = vmatprep.subr.mxu0 0.0
    %122 = vmatpush1.msra.mxu0 0.0
    %123 = vmatprep.subr.mxu0 0.0
    %124 = vmatpush1.msra.mxu0 0.0
    %125 = vmatprep.subr.mxu0 0.0
    %126 = vmatpush1.msra.mxu0 0.0
    %127 = vmatprep.subr.mxu0 0.0
    %128 = vmatpush1.msra.mxu0 0.0
    %129 = vmatprep.subr.mxu0 0.0
    %130 = vmatpush1.msra.mxu0 0.0
    %131 = vmatprep.mubr.f32.mxu0 0.0
    %132 = vmatmul.mubr.f32.gmra.mrb[0].mxu0 %v56
    %v133 = vpop.f32.mrb[0].mxu0
    %v134 = vadd.f32 %v37, %v133
    %v135 = vpop.f32.mrb[0].mxu0
    %136 = vmatprep.mubr.f32.mxu0 0.0
    %137 = vmatmul.mubr.f32.gmra.mrb[0].mxu0 %v59
    %v138 = vpop.f32.mrb[0].mxu0
    %v139 = vadd.f32 %v42, %v138
    %v140 = vpop.f32.mrb[0].mxu0
    %141 = vmatprep.mubr.f32.mxu0 0.0
    %142 = vmatmul.mubr.f32.gmra.mrb[0].mxu0 %v62
    %v143 = vpop.f32.mrb[0].mxu0
    %v144 = vadd.f32 %v47, %v143
    %v145 = vpop.f32.mrb[0].mxu0
    %146 = vmatprep.mubr.f32.mxu0 0.0
    %147 = vmatmul.mubr.f32.gmra.mrb[0].mxu0 %v65
    %v148 = vpop.f32.mrb[0].mxu0
    %v149 = vadd.f32 %v52, %v148
    %v150 = vpop.f32.mrb[0].mxu0
    %151 = vdwg.mxu0
    %v152 = vmax.f32 %v134, 0.0
    %v153 = vmax.f32 %v139, 0.0
    %v154 = vmax.f32 %v144, 0.0
    %v155 = vmax.f32 %v149, 0.0
    %v156 = vld [vmem:[%s3] sm:$0xff]
    %v157 = vld [vmem:[%s3 + $0x8] sm:$0xff]
    %v158 = vld [vmem:[%s3 + $0x10] sm:$0xff]
    %v159 = vld [vmem:[%s3 + $0x18] sm:$0xff]
    %v160 = vld [vmem:[%s4] sm:$0xff]
    %v161 = vld [vmem:[%s4 + $0x8] sm:$0xff]
    %v162 = vld [vmem:[%s4 + $0x10] sm:$0xff]
    %v163 = vld [vmem:[%s4 + $0x18] sm:$0xff]
    %165 = vset.pattern.permute.xlu0 0
    %166 = vperm.xlu0 %165, %v160
    %v167 = vpop.permute.xlu0 %166
    %170 = vset.pattern.permute.xlu0 0
    %171 = vperm.xlu0 %170, %v161
    %v172 = vpop.permute.xlu0 %171
    %175 = vset.pattern.permute.xlu0 0
    %176 = vperm.xlu0 %175, %v162
    %v177 = vpop.permute.xlu0 %176
    %180 = vset.pattern.permute.xlu0 0
    %181 = vperm.xlu0 %180, %v163
    %v182 = vpop.permute.xlu0 %181
    %vm184 = vcmask 261120
    %v186 = vsel %vm184, %v156, 0
    %v189 = vsel %vm184, %v157, 0
    %v192 = vsel %vm184, %v158, 0
    %v195 = vsel %vm184, %v159, 0
    %197 = vmatprep.subr.mxu0 0.0
    %198 = vmatpush1.msra.mxu0 %v152
    %199 = vmatprep.subr.mxu0 0.0
    %200 = vmatpush1.msra.mxu0 %v153
    %201 = vmatprep.subr.mxu0 0.0
    %202 = vmatpush1.msra.mxu0 %v154
    %203 = vmatprep.subr.mxu0 0.0
    %204 = vmatpush1.msra.mxu0 %v155
    %205 = vmatprep.subr.mxu0 0.0
    %206 = vmatpush1.msra.mxu0 0.0
    %207 = vmatprep.subr.mxu0 0.0
    %208 = vmatpush1.msra.mxu0 0.0
    %209 = vmatprep.subr.mxu0 0.0
    %210 = vmatpush1.msra.mxu0 0.0
    %211 = vmatprep.subr.mxu0 0.0
    %212 = vmatpush1.msra.mxu0 0.0
    %213 = vmatprep.subr.mxu0 0.0
    %214 = vmatpush1.msra.mxu0 0.0
    %215 = vmatprep.subr.mxu0 0.0
    %216 = vmatpush1.msra.mxu0 0.0
    %217 = vmatprep.subr.mxu0 0.0
    %218 = vmatpush1.msra.mxu0 0.0
    %219 = vmatprep.subr.mxu0 0.0
    %220 = vmatpush1.msra.mxu0 0.0
    %221 = vmatprep.subr.mxu0 0.0
    %222 = vmatpush1.msra.mxu0 0.0
    %223 = vmatprep.subr.mxu0 0.0
    %224 = vmatpush1.msra.mxu0 0.0
    %225 = vmatprep.subr.mxu0 0.0
    %226 = vmatpush1.msra.mxu0 0.0
    %227 = vmatprep.subr.mxu0 0.0
    %228 = vmatpush1.msra.mxu0 0.0
    %229 = vmatprep.subr.mxu0 0.0
    %230 = vmatpush1.msra.mxu0 0.0
    %231 = vmatprep.subr.mxu0 0.0
    %232 = vmatpush1.msra.mxu0 0.0
    %233 = vmatprep.subr.mxu0 0.0
    %234 = vmatpush1.msra.mxu0 0.0
    %235 = vmatprep.subr.mxu0 0.0
    %236 = vmatpush1.msra.mxu0 0.0
    %237 = vmatprep.subr.mxu0 0.0
    %238 = vmatpush1.msra.mxu0 0.0
    %239 = vmatprep.subr.mxu0 0.0
    %240 = vmatpush1.msra.mxu0 0.0
    %241 = vmatprep.subr.mxu0 0.0
    %242 = vmatpush1.msra.mxu0 0.0
    %243 = vmatprep.subr.mxu0 0.0
    %244 = vmatpush1.msra.mxu0 0.0
    %245 = vmatprep.subr.mxu0 0.0
    %246 = vmatpush1.msra.mxu0 0.0
    %247 = vmatprep.subr.mxu0 0.0
    %248 = vmatpush1.msra.mxu0 0.0
    %249 = vmatprep.subr.mxu0 0.0
    %250 = vmatpush1.msra.mxu0 0.0
    %251 = vmatprep.subr.mxu0 0.0
    %252 = vmatpush1.msra.mxu0 0.0
    %253 = vmatprep.subr.mxu0 0.0
    %254 = vmatpush1.msra.mxu0 0.0
    %255 = vmatprep.subr.mxu0 0.0
    %256 = vmatpush1.msra.mxu0 0.0
    %257 = vmatprep.subr.mxu0 0.0
    %258 = vmatpush1.msra.mxu0 0.0
    %259 = vmatprep.subr.mxu0 0.0
    %260 = vmatpush1.msra.mxu0 0.0
    %261 = vmatprep.mubr.f32.mxu0 0.0
    %262 = vmatmul.mubr.f32.gmra.mrb[0].mxu0 %v186
    %v263 = vpop.f32.mrb[0].mxu0
    %v264 = vadd.f32 %v167, %v263
    %v265 = vpop.f32.mrb[0].mxu0
    %266 = vmatprep.mubr.f32.mxu0 0.0
    %267 = vmatmul.mubr.f32.gmra.mrb[0].mxu0 %v189
    %v268 = vpop.f32.mrb[0].mxu0
    %v269 = vadd.f32 %v172, %v268
    %v270 = vpop.f32.mrb[0].mxu0
    %271 = vmatprep.mubr.f32.mxu0 0.0
    %272 = vmatmul.mubr.f32.gmra.mrb[0].mxu0 %v192
    %v273 = vpop.f32.mrb[0].mxu0
    %v274 = vadd.f32 %v177, %v273
    %v275 = vpop.f32.mrb[0].mxu0
    %276 = vmatprep.mubr.f32.mxu0 0.0
    %277 = vmatmul.mubr.f32.gmra.mrb[0].mxu0 %v195
    %v278 = vpop.f32.mrb[0].mxu0
    %v279 = vadd.f32 %v182, %v278
    %v280 = vpop.f32.mrb[0].mxu0
    %281 = vdwg.mxu0
    %v282 = vmax.f32 %v264, 0.0
    %v283 = vmax.f32 %v269, 0.0
    %v284 = vmax.f32 %v274, 0.0
    %v285 = vmax.f32 %v279, 0.0
    %v286 = vld [vmem:[%s5] sm:$0xff]
    %v288 = vsel %vm184, %v286, 0
    %290 = vmatprep.subr.mxu0 0.0
    %291 = vmatpush1.msra.mxu0 %v282
    %292 = vmatprep.subr.mxu0 0.0
    %293 = vmatpush1.msra.mxu0 %v283
    %294 = vmatprep.subr.mxu0 0.0
    %295 = vmatpush1.msra.mxu0 %v284
    %296 = vmatprep.subr.mxu0 0.0
    %297 = vmatpush1.msra.mxu0 %v285
    %298 = vmatprep.subr.mxu0 0.0
    %299 = vmatpush1.msra.mxu0 0.0
    %300 = vmatprep.subr.mxu0 0.0
    %301 = vmatpush1.msra.mxu0 0.0
    %302 = vmatprep.subr.mxu0 0.0
    %303 = vmatpush1.msra.mxu0 0.0
    %304 = vmatprep.subr.mxu0 0.0
    %305 = vmatpush1.msra.mxu0 0.0
    %306 = vmatprep.subr.mxu0 0.0
    %307 = vmatpush1.msra.mxu0 0.0
    %308 = vmatprep.subr.mxu0 0.0
    %309 = vmatpush1.msra.mxu0 0.0
    %310 = vmatprep.subr.mxu0 0.0
    %311 = vmatpush1.msra.mxu0 0.0
    %312 = vmatprep.subr.mxu0 0.0
    %313 = vmatpush1.msra.mxu0 0.0
    %314 = vmatprep.subr.mxu0 0.0
    %315 = vmatpush1.msra.mxu0 0.0
    %316 = vmatprep.subr.mxu0 0.0
    %317 = vmatpush1.msra.mxu0 0.0
    %318 = vmatprep.subr.mxu0 0.0
    %319 = vmatpush1.msra.mxu0 0.0
    %320 = vmatprep.subr.mxu0 0.0
    %321 = vmatpush1.msra.mxu0 0.0
    %322 = vmatprep.subr.mxu0 0.0
    %323 = vmatpush1.msra.mxu0 0.0
    %324 = vmatprep.subr.mxu0 0.0
    %325 = vmatpush1.msra.mxu0 0.0
    %326 = vmatprep.subr.mxu0 0.0
    %327 = vmatpush1.msra.mxu0 0.0
    %328 = vmatprep.subr.mxu0 0.0
    %329 = vmatpush1.msra.mxu0 0.0
    %330 = vmatprep.subr.mxu0 0.0
    %331 = vmatpush1.msra.mxu0 0.0
    %332 = vmatprep.subr.mxu0 0.0
    %333 = vmatpush1.msra.mxu0 0.0
    %334 = vmatprep.subr.mxu0 0.0
    %335 = vmatpush1.msra.mxu0 0.0
    %336 = vmatprep.subr.mxu0 0.0
    %337 = vmatpush1.msra.mxu0 0.0
    %338 = vmatprep.subr.mxu0 0.0
    %339 = vmatpush1.msra.mxu0 0.0
    %340 = vmatprep.subr.mxu0 0.0
    %341 = vmatpush1.msra.mxu0 0.0
    %342 = vmatprep.subr.mxu0 0.0
    %343 = vmatpush1.msra.mxu0 0.0
    %344 = vmatprep.subr.mxu0 0.0
    %345 = vmatpush1.msra.mxu0 0.0
    %346 = vmatprep.subr.mxu0 0.0
    %347 = vmatpush1.msra.mxu0 0.0
    %348 = vmatprep.subr.mxu0 0.0
    %349 = vmatpush1.msra.mxu0 0.0
    %350 = vmatprep.subr.mxu0 0.0
    %351 = vmatpush1.msra.mxu0 0.0
    %352 = vmatprep.subr.mxu0 0.0
    %353 = vmatpush1.msra.mxu0 0.0
    %354 = vmatprep.mubr.f32.mxu0 0.0
    %355 = vmatmul.mubr.f32.gmra.mrb[0].mxu0 %v288
    %v356 = vpop.f32.mrb[0].mxu0
    %v357 = vadd.f32 0.0, %v356
    %v358 = vpop.f32.mrb[0].mxu0
    %359 = vdwg.mxu0
    %360 = vst [vmem:[#allocation2] sm:$0xff] %v357
    // Predicated region
    $region26: #{tpu_custom_call.1} parent=1 // pred_check
      _
    $region27: #{tpu_custom_call.1} parent=1 // pred_check_branch
      %362 = sbr.rel (0) target = $region29
    $region28: #{tpu_custom_call.1} parent=1 // pred_region
      %s364 = ssub.s32 128, 128
      %365 = vsyncadd [#allocation3], %s364
      %s367 = sshll.u32 [#allocation2], 4
      %s368 = int_to_ptr.vmem [resolvable:$true] %s367
      %370 = dma.vmem_to_hbm [thread:$0]  %s368, 128, %s6, [#allocation3]
    $region29: #{tpu_custom_call.1} parent=1 // pred_fallthru
      _
    // Predicated region
    $region30: #{tpu_custom_call.1} parent=1 // pred_check
      _
    $region31: #{tpu_custom_call.1} parent=1 // pred_check_branch
      %372 = sbr.rel (0) target = $region33
    $region32: #{tpu_custom_call.1} parent=1 // pred_region
      %373 = dma.done [#allocation3], 128
    $region33: #{tpu_custom_call.1} parent=1 // pred_fallthru
      _
    %374 = vsyncpa [#allocation3], 1

</llo_original>
